<compile_context>
chip_gen: v7x
topology: tpu7x:2x2x1
jax: 0.10.0
libtpu: 0.0.40
codegen_flags: <defaults>
</compile_context>

<pallas_src>
import functools

import jax
import jax.numpy as jnp
from jax.experimental import pallas as pl
from jax.experimental.pallas import tpu as pltpu


# ---------------------------------------------------------------------------
# Kernels
# ---------------------------------------------------------------------------

def ca_kernel(x_ref, w1_ref, b1_ref, w2_ref, b2_ref, o_ref):
    """Single-pass CA: x (Bt,C,HWp); w1t (C,Cr) pre-scaled by 1/HW; b1 (1,Cr);
    w2t (Cr,C); b2 (1,C); o (Bt,C,HWp)."""
    x = x_ref[...]
    # Squeeze: per-image, per-channel spatial sum (padded lanes contribute 0).
    pooled = jnp.sum(x.astype(jnp.float32), axis=-1)                 # (Bt, C)
    # Excite: two 1x1 convs over channels, batched over the Bt images.
    h = jnp.dot(pooled, w1_ref[...],
                preferred_element_type=jnp.float32) + b1_ref[...]    # (Bt, Cr)
    h = jnp.maximum(h, 0.0)                                          # ReLU
    y = jnp.dot(h, w2_ref[...],
                preferred_element_type=jnp.float32) + b2_ref[...]    # (Bt, C)
    y = jax.nn.sigmoid(y)                                            # EUP
    # Scale: one lane-dense full-block store.
    o_ref[...] = (x.astype(jnp.float32) * y[:, :, None]).astype(o_ref.dtype)


def pool_excite_kernel(x_ref, w1_ref, b1_ref, w2_ref, b2_ref, y_ref, acc_ref):
    """Two-pass fallback, pass 1: accumulate the spatial sum over HW tiles and
    emit the per-image gate y (1, C) at the last tile."""
    j = pl.program_id(1)

    @pl.when(j == 0)
    def _():
        acc_ref[...] = jnp.zeros_like(acc_ref)

    acc_ref[...] += jnp.sum(x_ref[...].astype(jnp.float32), axis=-1)  # (1, C)

    @pl.when(j == pl.num_programs(1) - 1)
    def _():
        pooled = acc_ref[...]                                         # (1, C)
        h = jnp.maximum(
            jnp.dot(pooled, w1_ref[...],
                    preferred_element_type=jnp.float32) + b1_ref[...], 0.0)
        g = jax.nn.sigmoid(
            jnp.dot(h, w2_ref[...],
                    preferred_element_type=jnp.float32) + b2_ref[...])
        y_ref[...] = g.astype(y_ref.dtype)


def scale_kernel(x_ref, y_ref, o_ref):
    """Two-pass fallback, pass 2: x (1,C,hw_tile) * y (1,C) broadcast."""
    o_ref[...] = (x_ref[...].astype(jnp.float32)
                  * y_ref[...][:, :, None]).astype(o_ref.dtype)


# ---------------------------------------------------------------------------
# Sizing helpers
# ---------------------------------------------------------------------------

def _round_up(n, m):
    return ((n + m - 1) // m) * m


def _tpu_vmem_limit_bytes():
    """Generation-aware scoped-VMEM limit: ~96 MiB on 128-MiB chips (v5e/v6e),
    ~55% of physical on 64-MiB chips (v7x)."""
    try:
        cap = int(pltpu.get_tpu_info().vmem_capacity_bytes)
    except Exception:
        cap = 64 << 20  # conservative default (v7x)
    if cap >= (100 << 20):
        return 96 << 20
    return max(16 << 20, int(cap * 0.55))


def _pick_block_batch(B, per_image_bytes, block_budget_bytes):
    """Images per grid step: as many as fit the block budget, but keep the
    grid >= 2 steps (DMA/compute overlap + both v7x TensorCores), and >= 4
    steps when blocks would still be >= 1 MiB."""
    if B == 1:
        return 1
    max_bt = max(1, block_budget_bytes // max(per_image_bytes, 1))
    candidates = [bt for bt in range(1, B + 1) if B % bt == 0 and bt <= max_bt]
    if not candidates:
        candidates = [1]
    for min_steps, min_block in ((4, 1 << 20), (2, 0)):
        ok = [bt for bt in candidates
              if (B // bt) >= min_steps and bt * per_image_bytes >= min_block]
        if ok:
            return max(ok)
    return max(candidates)


def _pad_lanes(x_flat, target):
    hw = x_flat.shape[-1]
    if target == hw:
        return x_flat
    return jnp.pad(x_flat, ((0, 0), (0, 0), (0, target - hw)))


# ---------------------------------------------------------------------------
# pallas_call wrappers
# ---------------------------------------------------------------------------

def _ca_single_pass(x_flat, w1t, b1r, w2t, b2r, bt, vmem_limit):
    B, C, HWp = x_flat.shape
    Cr = w1t.shape[1]
    itemsize = x_flat.dtype.itemsize
    cost = pl.CostEstimate(
        flops=4 * B * C * Cr + 2 * B * C * HWp,
        transcendentals=B * C,
        bytes_accessed=2 * B * C * HWp * itemsize,
    )
    return pl.pallas_call(
        ca_kernel,
        out_shape=jax.ShapeDtypeStruct((B, C, HWp), x_flat.dtype),
        grid_spec=pltpu.PrefetchScalarGridSpec(
            num_scalar_prefetch=0,
            grid=(B // bt,),
            in_specs=[
                pl.BlockSpec((bt, C, HWp), lambda i: (i, 0, 0)),   # x block
                # Params: full-array blocks with constant index_maps -> they
                # stay resident in VMEM across grid steps (tiny).
                pl.BlockSpec((C, Cr), lambda i: (0, 0)),
                pl.BlockSpec((1, Cr), lambda i: (0, 0)),
                pl.BlockSpec((Cr, C), lambda i: (0, 0)),
                pl.BlockSpec((1, C), lambda i: (0, 0)),
            ],
            out_specs=pl.BlockSpec((bt, C, HWp), lambda i: (i, 0, 0)),
        ),
        compiler_params=pltpu.CompilerParams(
            dimension_semantics=("parallel",),
            vmem_limit_bytes=vmem_limit,
        ),
        cost_estimate=cost,
    )(x_flat, w1t, b1r, w2t, b2r)


def _ca_two_pass(x_flat, w1t, b1r, w2t, b2r, hw_tile, vmem_limit):
    B, C, HWp = x_flat.shape
    Cr = w1t.shape[1]
    n_hw = HWp // hw_tile

    # Pass 1: pooled spatial sums -> per-image channel gates y (B, C).
    y = pl.pallas_call(
        pool_excite_kernel,
        out_shape=jax.ShapeDtypeStruct((B, C), jnp.float32),
        grid_spec=pltpu.PrefetchScalarGridSpec(
            num_scalar_prefetch=0,
            grid=(B, n_hw),
            in_specs=[
                pl.BlockSpec((1, C, hw_tile), lambda b, j: (b, 0, j)),
                pl.BlockSpec((C, Cr), lambda b, j: (0, 0)),
                pl.BlockSpec((1, Cr), lambda b, j: (0, 0)),
                pl.BlockSpec((Cr, C), lambda b, j: (0, 0)),
                pl.BlockSpec((1, C), lambda b, j: (0, 0)),
            ],
            out_specs=pl.BlockSpec((1, C), lambda b, j: (b, 0)),
            scratch_shapes=[pltpu.VMEM((1, C), jnp.float32)],
        ),
        compiler_params=pltpu.CompilerParams(
            dimension_semantics=("parallel", "arbitrary"),
            vmem_limit_bytes=vmem_limit,
        ),
    )(x_flat, w1t, b1r, w2t, b2r)

    # Pass 2: re-stream x and apply the gates.
    return pl.pallas_call(
        scale_kernel,
        out_shape=jax.ShapeDtypeStruct((B, C, HWp), x_flat.dtype),
        grid_spec=pltpu.PrefetchScalarGridSpec(
            num_scalar_prefetch=0,
            grid=(B, n_hw),
            in_specs=[
                pl.BlockSpec((1, C, hw_tile), lambda b, j: (b, 0, j)),
                pl.BlockSpec((1, C), lambda b, j: (b, 0)),
            ],
            out_specs=pl.BlockSpec((1, C, hw_tile), lambda b, j: (b, 0, j)),
        ),
        compiler_params=pltpu.CompilerParams(
            dimension_semantics=("parallel", "parallel"),
            vmem_limit_bytes=vmem_limit,
        ),
    )(x_flat, y)


def ca_layer(x, w1, b1, w2, b2, *, max_block_bytes=None):
    """CALayer forward.  x: (B, C, H, W) NCHW.  Returns same shape/dtype.

    max_block_bytes overrides the derived per-block VMEM budget (testing)."""
    B, C, H, W = x.shape
    Cr = w1.shape[0]
    HW = H * W
    itemsize = x.dtype.itemsize

    # Parameter prep (trace-time, free): fold 1/(H*W) of the avg-pool into w1,
    # pre-transpose both weights, biases as broadcastable rows.
    w1t = (w1.astype(jnp.float32) / float(HW)).T          # (C, Cr)
    b1r = b1.astype(jnp.float32).reshape(1, Cr)           # (1, Cr)
    w2t = w2.astype(jnp.float32).T                         # (Cr, C)
    b2r = b2.astype(jnp.float32).reshape(1, C)             # (1, C)
    # TODO(synk): optionally stream x in bf16 (f32 pool accumulation kept) to
    # halve HBM bytes; left as an interface/numerics decision.

    vmem_limit = _tpu_vmem_limit_bytes()
    block_budget = max(1 << 20, (vmem_limit - (4 << 20)) // 4)
    if max_block_bytes is not None:
        block_budget = max_block_bytes

    HWp = _round_up(HW, 128)                               # lane-dense stores
    per_image_bytes = C * HWp * itemsize

    if per_image_bytes <= block_budget:
        bt = _pick_block_batch(B, per_image_bytes, block_budget)
        x_flat = _pad_lanes(x.reshape(B, C, HW), HWp)
        out_flat = _ca_single_pass(x_flat, w1t, b1r, w2t, b2r, bt, vmem_limit)
    else:
        # Very large per-image footprint (binding on v7x's 64 MiB VMEM):
        # two-pass pool+excite / scale over HW tiles.
        hw_tile = max(128, (block_budget // (C * itemsize)) // 128 * 128)
        HWp2 = _round_up(HW, hw_tile)
        x_flat = _pad_lanes(x.reshape(B, C, HW), HWp2)
        out_flat = _ca_two_pass(x_flat, w1t, b1r, w2t, b2r, hw_tile, vmem_limit)

    return out_flat[..., :HW].reshape(B, C, H, W)


def ca_layer_ref(x, w1, b1, w2, b2):
    """Pure-JAX reference mirroring the PyTorch forward."""
    pooled = jnp.mean(x, axis=(2, 3))                      # (B, C)
    h = jnp.maximum(pooled @ w1.T + b1, 0.0)               # (B, Cr)
    y = jax.nn.sigmoid(h @ w2.T + b2)                      # (B, C)
    return x * y[:, :, None, None]


if __name__ == "__main__":
    channel, reduction = 64, 16
    Cr = channel // reduction
    B, H, W = 4, 16, 16          # H*W = 256 -> lane-dense (multiple of 128)

    key = jax.random.PRNGKey(0)
    k_x, k_w1, k_b1, k_w2, k_b2 = jax.random.split(key, 5)

    x = jax.random.normal(k_x, (B, channel, H, W), dtype=jnp.float32)
    # Conv2d 1x1 == dense over channels.
    w1 = 0.1 * jax.random.normal(k_w1, (Cr, channel), dtype=jnp.float32)
    b1 = 0.1 * jax.random.normal(k_b1, (Cr,), dtype=jnp.float32)
    w2 = 0.1 * jax.random.normal(k_w2, (channel, Cr), dtype=jnp.float32)
    b2 = 0.1 * jax.random.normal(k_b2, (channel,), dtype=jnp.float32)

    ref = ca_layer_ref(x, w1, b1, w2, b2)

    # Main path: single-pass batched-block kernel.
    out = jax.block_until_ready(ca_layer(x, w1, b1, w2, b2))
    assert out.shape == x.shape and out.dtype == x.dtype
    assert jnp.allclose(out, ref, atol=1e-5, rtol=1e-5), "single-pass mismatch"

    # Also exercise the large-image two-pass fallback by forcing a tiny
    # per-block budget (correctness check only; real use picks it from VMEM).
    out2 = jax.block_until_ready(
        ca_layer(x, w1, b1, w2, b2, max_block_bytes=32 * 1024))
    assert jnp.allclose(out2, ref, atol=1e-5, rtol=1e-5), "two-pass mismatch"

    print("KERNEL_OK")
</pallas_src>

<mosaic_0001>
module attributes {stable_mosaic.version = 11 : i64} {
  func.func @ca_kernel(%arg0: i32, %arg1: memref<2x64x256xf32, #tpu.memory_space<vmem>>, %arg2: memref<64x4xf32, #tpu.memory_space<vmem>>, %arg3: memref<1x4xf32, #tpu.memory_space<vmem>>, %arg4: memref<4x64xf32, #tpu.memory_space<vmem>>, %arg5: memref<1x64xf32, #tpu.memory_space<vmem>>, %arg6: memref<2x64x256xf32, #tpu.memory_space<vmem>>) attributes {dimension_semantics = [#tpu.dimension_semantics<parallel>], iteration_bounds = array<i64: 2>, scalar_prefetch = 0 : i64, scratch_operands = 0 : i64, tpu.core_type = #tpu.core_type<tc>, window_params = [{transform_indices = @transform_0, window_bounds = array<i64: 2, 64, 256>}, {pipeline_mode = #tpu.pipeline_mode<synchronous>, transform_indices = @transform_1, window_bounds = array<i64: 64, 4>}, {pipeline_mode = #tpu.pipeline_mode<synchronous>, transform_indices = @transform_2, window_bounds = array<i64: 1, 4>}, {pipeline_mode = #tpu.pipeline_mode<synchronous>, transform_indices = @transform_3, window_bounds = array<i64: 4, 64>}, {pipeline_mode = #tpu.pipeline_mode<synchronous>, transform_indices = @transform_4, window_bounds = array<i64: 1, 64>}, {transform_indices = @transform_5, window_bounds = array<i64: 2, 64, 256>}]} {
    %c0 = arith.constant 0 : index
    %c0_0 = arith.constant 0 : index
    %c0_1 = arith.constant 0 : index
    %0 = vector.load %arg1[%c0, %c0_0, %c0_1] : memref<2x64x256xf32, #tpu.memory_space<vmem>>, vector<2x64x256xf32>
    %cst = arith.constant dense<0.000000e+00> : vector<2x64xf32>
    %1 = vector.multi_reduction <add>, %0, %cst [2] : vector<2x64x256xf32> to vector<2x64xf32>
    %c0_2 = arith.constant 0 : index
    %c0_3 = arith.constant 0 : index
    %2 = vector.load %arg2[%c0_2, %c0_3] : memref<64x4xf32, #tpu.memory_space<vmem>>, vector<64x4xf32>
    %cst_4 = arith.constant dense<0.000000e+00> : vector<2x4xf32>
    %3 = tpu.matmul %1, %2, %cst_4 {dimension_numbers = #tpu.dot_dimension_numbers<[1], [0], [0], [1], [0, 0, 1, 1], [], []>} : vector<2x64xf32>, vector<64x4xf32>, vector<2x4xf32> -> vector<2x4xf32>
    %c0_5 = arith.constant 0 : index
    %c0_6 = arith.constant 0 : index
    %4 = vector.load %arg3[%c0_5, %c0_6] : memref<1x4xf32, #tpu.memory_space<vmem>>, vector<1x4xf32>
    %5 = vector.broadcast %4 : vector<1x4xf32> to vector<2x4xf32>
    %6 = arith.addf %3, %5 : vector<2x4xf32>
    %cst_7 = arith.constant 0.000000e+00 : f32
    %7 = vector.broadcast %cst_7 : f32 to vector<2x4xf32>
    %8 = arith.maximumf %6, %7 : vector<2x4xf32>
    %c0_8 = arith.constant 0 : index
    %c0_9 = arith.constant 0 : index
    %9 = vector.load %arg4[%c0_8, %c0_9] : memref<4x64xf32, #tpu.memory_space<vmem>>, vector<4x64xf32>
    %cst_10 = arith.constant dense<0.000000e+00> : vector<2x64xf32>
    %10 = tpu.matmul %8, %9, %cst_10 {dimension_numbers = #tpu.dot_dimension_numbers<[1], [0], [0], [1], [0, 0, 1, 1], [], []>} : vector<2x4xf32>, vector<4x64xf32>, vector<2x64xf32> -> vector<2x64xf32>
    %c0_11 = arith.constant 0 : index
    %c0_12 = arith.constant 0 : index
    %11 = vector.load %arg5[%c0_11, %c0_12] : memref<1x64xf32, #tpu.memory_space<vmem>>, vector<1x64xf32>
    %12 = vector.broadcast %11 : vector<1x64xf32> to vector<2x64xf32>
    %13 = arith.addf %10, %12 : vector<2x64xf32>
    %14 = arith.negf %13 : vector<2x64xf32>
    %15 = math.exp %14 : vector<2x64xf32>
    %cst_13 = arith.constant 1.000000e+00 : f32
    %16 = vector.broadcast %cst_13 : f32 to vector<2x64xf32>
    %17 = arith.addf %16, %15 : vector<2x64xf32>
    %18 = arith.divf %16, %17 : vector<2x64xf32>
    %19 = vector.shape_cast %18 : vector<2x64xf32> to vector<2x64x1xf32>
    %20 = vector.broadcast %19 : vector<2x64x1xf32> to vector<2x64x256xf32>
    %21 = arith.mulf %0, %20 : vector<2x64x256xf32>
    %c0_14 = arith.constant 0 : index
    %c0_15 = arith.constant 0 : index
    %c0_16 = arith.constant 0 : index
    %22 = vector.load %arg6[%c0_14, %c0_15, %c0_16] : memref<2x64x256xf32, #tpu.memory_space<vmem>>, vector<2x64x256xf32>
    tpu.vector_store %arg6[%c0_14, %c0_15, %c0_16], %21 {strides = array<i32>} : memref<2x64x256xf32, #tpu.memory_space<vmem>>, vector<2x64x256xf32>,
    return
  }
  func.func @transform_0(%arg0: i32) -> (i32, i32, i32) {
    %c0_i32 = arith.constant 0 : i32
    %c0_i32_0 = arith.constant 0 : i32
    %c0_i32_1 = arith.constant 0 : i32
    return %arg0, %c0_i32, %c0_i32_0 : i32, i32, i32
  }
  func.func @transform_1(%arg0: i32) -> (i32, i32) {
    %c0_i32 = arith.constant 0 : i32
    %c0_i32_0 = arith.constant 0 : i32
    %c0_i32_1 = arith.constant 0 : i32
    return %c0_i32, %c0_i32_0 : i32, i32
  }
  func.func @transform_2(%arg0: i32) -> (i32, i32) {
    %c0_i32 = arith.constant 0 : i32
    %c0_i32_0 = arith.constant 0 : i32
    %c0_i32_1 = arith.constant 0 : i32
    return %c0_i32, %c0_i32_0 : i32, i32
  }
  func.func @transform_3(%arg0: i32) -> (i32, i32) {
    %c0_i32 = arith.constant 0 : i32
    %c0_i32_0 = arith.constant 0 : i32
    %c0_i32_1 = arith.constant 0 : i32
    return %c0_i32, %c0_i32_0 : i32, i32
  }
  func.func @transform_4(%arg0: i32) -> (i32, i32) {
    %c0_i32 = arith.constant 0 : i32
    %c0_i32_0 = arith.constant 0 : i32
    %c0_i32_1 = arith.constant 0 : i32
    return %c0_i32, %c0_i32_0 : i32, i32
  }
  func.func @transform_5(%arg0: i32) -> (i32, i32, i32) {
    %c0_i32 = arith.constant 0 : i32
    %c0_i32_0 = arith.constant 0 : i32
    %c0_i32_1 = arith.constant 0 : i32
    return %arg0, %c0_i32, %c0_i32_0 : i32, i32, i32
  }
}

</mosaic_0001>

<llo_original>
// kernel: tpu_custom_call.1
$region0: #{tpu_custom_call.1}
  #allocation0 [shape = 'u32[]', space=smem, size = 0x4, offset = 0x4, fixed_abs, tag = 'smem constant byte address 0x4 - core index']
  #allocation1 [shape = 'u32[144,128]{1,0:T(1,128)}', space=vmem, size = 0x12000, scoped, tag = 'internal scratch']
  %s0 = inlined_call_operand.hbm [shape: f32[4,64,256], index: 0, kind: input, shape index: {}]
  %s1 = inlined_call_operand.vmem [shape: f32[64,4], index: 1, kind: input, shape index: {}]
  %s2 = inlined_call_operand.vmem [shape: f32[1,4], index: 2, kind: input, shape index: {}]
  %s3 = inlined_call_operand.vmem [shape: f32[4,64], index: 3, kind: input, shape index: {}]
  %s4 = inlined_call_operand.vmem [shape: f32[1,64], index: 4, kind: input, shape index: {}]
  %s5 = inlined_call_operand.hbm [shape: f32[4,64,256], index: 5, kind: output, shape index: {}]
  %s6 = sld [smem:[#allocation0]]
  $region57: #{tpu_custom_call.1} parent=0
    _
  %s8 = ssub.s32 1, %s6
  %s9 = scalar_select 0, %s8, %s6
  $region1: #{tpu_custom_call.1} parent=0
    #allocation2 [shape = 'u8[262144]{0}', space=vmem, size = 0x40000, scoped, tag = 'input window, operand 0']
    #allocation3 [shape = 's32[2]{0}', space=sflag, size = 0x8, scoped, tag = 'scoped memory for tpu_custom_call.1']
    #allocation4 [shape = 's32[2]{0}', space=sflag, size = 0x8, scoped, tag = 'scoped memory for tpu_custom_call.1']
    #allocation5 [shape = 'u8[262144]{0}', space=vmem, size = 0x40000, scoped, tag = 'output window, operand 0']
    %10 = vsyncpa [#allocation3], 0
    %s11 = scalar_lea.sflag [#allocation3], 1
    %12 = vsyncpa %s11, 0
    %13 = vsyncpa [#allocation4], 0
    %s14 = scalar_lea.sflag [#allocation4], 1
    %15 = vsyncpa %s14, 0
    loop: start=0, step=1, limit=4
    $region2: #{tpu_custom_call.1} parent=1 // loop_pre_header
      _
    $region3: #{tpu_custom_call.1} parent=1 // loop_header
      %s17 = sphi 0, %s21
      %p18 = scmp.ge.s32.totalorder %s17, 4
      %s27 = sphi 0, %s29
      %s30 = sphi 0, %s27
      %s31 = sphi 0, %s30
      %s47 = sphi 0, %s31
      %s51 = sphi 0, %s51
      %s53 = sphi 0, %s51
      %s54 = sphi 0, %s53
      %s68 = sphi 0, %s54
      %s72 = sphi 0, %s72
      %s74 = sphi 0, %s72
      %s75 = sphi 0, %s74
      %s89 = sphi 0, %s75
      %s93 = sphi 0, %s93
      %s95 = sphi 0, %s93
      %s96 = sphi 0, %s95
      %s110 = sphi 0, %s96
      %s114 = sphi 0, %s114
      %s116 = sphi 0, %s114
      %s117 = sphi 0, %s116
      %s131 = sphi 0, %s117
      %s137 = sphi 0, %s139
      %s140 = sphi 0, %s137
      %s141 = sphi 0, %s140
      %s157 = sphi 0, %s141
    $region4: #{tpu_custom_call.1} parent=1 // loop_header_branch
      %20 = sbr.rel (%p18) target = $region8
    $region5: #{tpu_custom_call.1} parent=1 // loop_body
      %s22 = ssub.s32 %s17, 1
      %s23 = ssub.s32 %s17, 2
      %s24 = sadd.s32 %s17, 1
      %s25 = ssub.s32 %s17, %s24
      %p26 = scmp.eq.s32.totalorder %s25, 0
      %s28 = sadd.s32 %s27, 1
      %s29 = scalar_select %p26, %s27, %s28
      %p32 = pneg %p26
      %p33 = scmp.eq.s32.totalorder %s17, 1
      %p34 = por %p32, %p33
      %p35 = scmp.ne.s32.totalorder %s27, %s30
      %p36 = scmp.eq.s32.totalorder %s17, 0
      %p37 = por %p35, %p36
      %p38 = scmp.ne.s32.totalorder %s27, %s30
      %p39 = scmp.eq.s32.totalorder %s22, 1
      %p40 = por %p38, %p39
      %p41 = scmp.ne.s32.totalorder %s30, %s31
      %p42 = scmp.eq.s32.totalorder %s22, 0
      %p43 = por %p41, %p42
      %p44 = scmp.ne.s32.totalorder %s30, %s31
      %p45 = scmp.eq.s32.totalorder %s23, 1
      %p46 = por %p44, %p45
      %p48 = scmp.ne.s32.totalorder %s31, %s47
      %p49 = scmp.eq.s32.totalorder %s23, 0
      %p50 = por %p48, %p49
      %s52 = sadd.s32 %s51, 1
      %p55 = scmp.eq.s32.totalorder %s17, 1
      %p56 = scmp.ne.s32.totalorder %s51, %s53
      %p57 = scmp.eq.s32.totalorder %s17, 0
      %p58 = por %p56, %p57
      %p59 = scmp.ne.s32.totalorder %s51, %s53
      %p60 = scmp.eq.s32.totalorder %s22, 1
      %p61 = por %p59, %p60
      %p62 = scmp.ne.s32.totalorder %s53, %s54
      %p63 = scmp.eq.s32.totalorder %s22, 0
      %p64 = por %p62, %p63
      %p65 = scmp.ne.s32.totalorder %s53, %s54
      %p66 = scmp.eq.s32.totalorder %s23, 1
      %p67 = por %p65, %p66
      %p69 = scmp.ne.s32.totalorder %s54, %s68
      %p70 = scmp.eq.s32.totalorder %s23, 0
      %p71 = por %p69, %p70
      %s73 = sadd.s32 %s72, 1
      %p76 = scmp.eq.s32.totalorder %s17, 1
      %p77 = scmp.ne.s32.totalorder %s72, %s74
      %p78 = scmp.eq.s32.totalorder %s17, 0
      %p79 = por %p77, %p78
      %p80 = scmp.ne.s32.totalorder %s72, %s74
      %p81 = scmp.eq.s32.totalorder %s22, 1
      %p82 = por %p80, %p81
      %p83 = scmp.ne.s32.totalorder %s74, %s75
      %p84 = scmp.eq.s32.totalorder %s22, 0
      %p85 = por %p83, %p84
      %p86 = scmp.ne.s32.totalorder %s74, %s75
      %p87 = scmp.eq.s32.totalorder %s23, 1
      %p88 = por %p86, %p87
      %p90 = scmp.ne.s32.totalorder %s75, %s89
      %p91 = scmp.eq.s32.totalorder %s23, 0
      %p92 = por %p90, %p91
      %s94 = sadd.s32 %s93, 1
      %p97 = scmp.eq.s32.totalorder %s17, 1
      %p98 = scmp.ne.s32.totalorder %s93, %s95
      %p99 = scmp.eq.s32.totalorder %s17, 0
      %p100 = por %p98, %p99
      %p101 = scmp.ne.s32.totalorder %s93, %s95
      %p102 = scmp.eq.s32.totalorder %s22, 1
      %p103 = por %p101, %p102
      %p104 = scmp.ne.s32.totalorder %s95, %s96
      %p105 = scmp.eq.s32.totalorder %s22, 0
      %p106 = por %p104, %p105
      %p107 = scmp.ne.s32.totalorder %s95, %s96
      %p108 = scmp.eq.s32.totalorder %s23, 1
      %p109 = por %p107, %p108
      %p111 = scmp.ne.s32.totalorder %s96, %s110
      %p112 = scmp.eq.s32.totalorder %s23, 0
      %p113 = por %p111, %p112
      %s115 = sadd.s32 %s114, 1
      %p118 = scmp.eq.s32.totalorder %s17, 1
      %p119 = scmp.ne.s32.totalorder %s114, %s116
      %p120 = scmp.eq.s32.totalorder %s17, 0
      %p121 = por %p119, %p120
      %p122 = scmp.ne.s32.totalorder %s114, %s116
      %p123 = scmp.eq.s32.totalorder %s22, 1
      %p124 = por %p122, %p123
      %p125 = scmp.ne.s32.totalorder %s116, %s117
      %p126 = scmp.eq.s32.totalorder %s22, 0
      %p127 = por %p125, %p126
      %p128 = scmp.ne.s32.totalorder %s116, %s117
      %p129 = scmp.eq.s32.totalorder %s23, 1
      %p130 = por %p128, %p129
      %p132 = scmp.ne.s32.totalorder %s117, %s131
      %p133 = scmp.eq.s32.totalorder %s23, 0
      %p134 = por %p132, %p133
      %s135 = ssub.s32 %s17, %s24
      %p136 = scmp.eq.s32.totalorder %s135, 0
      %s138 = sadd.s32 %s137, 1
      %s139 = scalar_select %p136, %s137, %s138
      %p142 = pneg %p136
      %p143 = scmp.eq.s32.totalorder %s17, 1
      %p144 = por %p142, %p143
      %p145 = scmp.ne.s32.totalorder %s137, %s140
      %p146 = scmp.eq.s32.totalorder %s17, 0
      %p147 = por %p145, %p146
      %p148 = scmp.ne.s32.totalorder %s137, %s140
      %p149 = scmp.eq.s32.totalorder %s22, 1
      %p150 = por %p148, %p149
      %p151 = scmp.ne.s32.totalorder %s140, %s141
      %p152 = scmp.eq.s32.totalorder %s22, 0
      %p153 = por %p151, %p152
      %p154 = scmp.ne.s32.totalorder %s140, %s141
      %p155 = scmp.eq.s32.totalorder %s23, 1
      %p156 = por %p154, %p155
      %p158 = scmp.ne.s32.totalorder %s141, %s157
      %p159 = scmp.eq.s32.totalorder %s23, 0
      %p160 = por %p158, %p159
      %p161 = scmp.le.s32.totalorder 1, %s17
      %p162 = scmp.lt.s32.totalorder %s17, 3
      %p163 = pnand %p161, %p162
      %p164 = pneg %p163
      // Predicated region
      $region9: #{tpu_custom_call.1} parent=5 // pred_check
        _
      $region10: #{tpu_custom_call.1} parent=5 // pred_check_branch
        %166 = sbr.rel (%p163) target = $region12
      $region11: #{tpu_custom_call.1} parent=5 // pred_region
        %s167 = ssub.s32 %s17, 1
        // Predicated region
        $region13: #{tpu_custom_call.1} parent=11 // pred_check
          %p168 = pneg %p64
        $region14: #{tpu_custom_call.1} parent=11 // pred_check_branch
          %170 = sbr.rel (%p168) target = $region16
        $region15: #{tpu_custom_call.1} parent=11 // pred_region
          _
        $region16: #{tpu_custom_call.1} parent=11 // pred_fallthru
          _
        // Predicated region
        $region17: #{tpu_custom_call.1} parent=11 // pred_check
          %p171 = pneg %p85
        $region18: #{tpu_custom_call.1} parent=11 // pred_check_branch
          %173 = sbr.rel (%p171) target = $region20
        $region19: #{tpu_custom_call.1} parent=11 // pred_region
          _
        $region20: #{tpu_custom_call.1} parent=11 // pred_fallthru
          _
        // Predicated region
        $region21: #{tpu_custom_call.1} parent=11 // pred_check
          %p174 = pneg %p106
        $region22: #{tpu_custom_call.1} parent=11 // pred_check_branch
          %176 = sbr.rel (%p174) target = $region24
        $region23: #{tpu_custom_call.1} parent=11 // pred_region
          _
        $region24: #{tpu_custom_call.1} parent=11 // pred_fallthru
          _
        // Predicated region
        $region25: #{tpu_custom_call.1} parent=11 // pred_check
          %p177 = pneg %p127
        $region26: #{tpu_custom_call.1} parent=11 // pred_check_branch
          %179 = sbr.rel (%p177) target = $region28
        $region27: #{tpu_custom_call.1} parent=11 // pred_region
          _
        $region28: #{tpu_custom_call.1} parent=11 // pred_fallthru
          _
      $region12: #{tpu_custom_call.1} parent=5 // pred_fallthru
        _
      %p180 = scmp.lt.s32.totalorder %s17, 2
      // Predicated region
      $region29: #{tpu_custom_call.1} parent=5 // pred_check
        %p181 = pneg %p180
      $region30: #{tpu_custom_call.1} parent=5 // pred_check_branch
        %183 = sbr.rel (%p181) target = $region32
      $region31: #{tpu_custom_call.1} parent=5 // pred_region
        // Predicated region
        $region33: #{tpu_custom_call.1} parent=31 // pred_check
          %p184 = pneg %p37
        $region34: #{tpu_custom_call.1} parent=31 // pred_check_branch
          %186 = sbr.rel (%p184) target = $region36
        $region35: #{tpu_custom_call.1} parent=31 // pred_region
          %s187 = sand.u32 %s27, 1
          %s188 = scalar_lea.sflag [#allocation3], %s187
          %s189 = sand.u32 %s27, 1
          %s190 = smul.addr %s189, 256
          %s191 = scalar_lea.vmem [#allocation2], %s190
          %s192 = smul.u32 2, %s17
          %s194 = ssub.s32 4096, 4096
          %195 = vsyncadd %s188, %s194
          %s196 = smul.addr %s192, 16
          %s197 = smul.addr %s196, 128
          %s198 = scalar_lea.hbm %s0, %s197
          %s199 = sshll.u32 %s191, 4
          %s200 = int_to_ptr.vmem [resolvable:$true] %s199
          %205 = dma.hbm_to_vmem [thread:$0]  %s198, 4096, %s200, %s188, 256, 256, 16
        $region36: #{tpu_custom_call.1} parent=31 // pred_fallthru
          _
      $region32: #{tpu_custom_call.1} parent=5 // pred_fallthru
        _
      %p206 = scmp.le.s32.totalorder 1, %s17
      %p207 = scmp.lt.s32.totalorder %s17, 3
      %p208 = pnand %p206, %p207
      %p209 = pneg %p208
      // Predicated region
      $region37: #{tpu_custom_call.1} parent=5 // pred_check
        _
      $region38: #{tpu_custom_call.1} parent=5 // pred_check_branch
        %211 = sbr.rel (%p208) target = $region40
      $region39: #{tpu_custom_call.1} parent=5 // pred_region
        %s212 = ssub.s32 %s17, 1
        %s213 = sand.u32 %s30, 1
        %s214 = scalar_lea.sflag [#allocation3], %s213
        %s215 = sand.u32 %s30, 1
        %s216 = smul.addr %s215, 256
        %s217 = scalar_lea.vmem [#allocation2], %s216
        // Predicated region
        $region41: #{tpu_custom_call.1} parent=39 // pred_check
          %p218 = pneg %p43
        $region42: #{tpu_custom_call.1} parent=39 // pred_check_branch
          %220 = sbr.rel (%p218) target = $region44
        $region43: #{tpu_custom_call.1} parent=39 // pred_region
          %221 = dma.done %s214, 4096
        $region44: #{tpu_custom_call.1} parent=39 // pred_fallthru
          _
        %s222 = sand.u32 %s30, 1
        %s223 = scalar_lea.sflag [#allocation3], %s222
        %s224 = sand.u32 %s30, 1
        %s225 = smul.addr %s224, 256
        %s226 = scalar_lea.vmem [#allocation2], %s225
        %p227 = pneg %p43
        %p228 = pneg %p40
        %p229 = pneg %p64
        %p230 = pneg %p61
        %p231 = pneg %p85
        %p232 = pneg %p82
        %p233 = pneg %p106
        %p234 = pneg %p103
        %p235 = pneg %p127
        %p236 = pneg %p124
        %p237 = pneg %p153
        %p238 = pneg %p150
        %s239 = sand.u32 %s140, 1
        %s240 = scalar_lea.sflag [#allocation4], %s239
        %s241 = sand.u32 %s140, 1
        %s242 = smul.addr %s241, 256
        %s243 = scalar_lea.vmem [#allocation5], %s242
        %s244 = smul.u32 2, %s22
        %s245 = smul.u32 2, %s22
        %v246 = vld [vmem:[%s217] sm:$0xff]
        %v247 = vld [vmem:[%s217 + $0x8] sm:$0xff]
        %v248 = vld [vmem:[%s217 + $0x10] sm:$0xff]
        %v249 = vld [vmem:[%s217 + $0x18] sm:$0xff]
        %v250 = vld [vmem:[%s217 + $0x20] sm:$0xff]
        %v251 = vld [vmem:[%s217 + $0x28] sm:$0xff]
        %v252 = vld [vmem:[%s217 + $0x30] sm:$0xff]
        %v253 = vld [vmem:[%s217 + $0x38] sm:$0xff]
        %v254 = vld [vmem:[%s217 + $0x40] sm:$0xff]
        %v255 = vld [vmem:[%s217 + $0x48] sm:$0xff]
        %v256 = vld [vmem:[%s217 + $0x50] sm:$0xff]
        %v257 = vld [vmem:[%s217 + $0x58] sm:$0xff]
        %v258 = vld [vmem:[%s217 + $0x60] sm:$0xff]
        %v259 = vld [vmem:[%s217 + $0x68] sm:$0xff]
        %v260 = vld [vmem:[%s217 + $0x70] sm:$0xff]
        %v261 = vld [vmem:[%s217 + $0x78] sm:$0xff]
        %v262 = vld [vmem:[%s217 + $0x80] sm:$0xff]
        %v263 = vld [vmem:[%s217 + $0x88] sm:$0xff]
        %v264 = vld [vmem:[%s217 + $0x90] sm:$0xff]
        %v265 = vld [vmem:[%s217 + $0x98] sm:$0xff]
        %v266 = vld [vmem:[%s217 + $0xa0] sm:$0xff]
        %v267 = vld [vmem:[%s217 + $0xa8] sm:$0xff]
        %v268 = vld [vmem:[%s217 + $0xb0] sm:$0xff]
        %v269 = vld [vmem:[%s217 + $0xb8] sm:$0xff]
        %v270 = vld [vmem:[%s217 + $0xc0] sm:$0xff]
        %v271 = vld [vmem:[%s217 + $0xc8] sm:$0xff]
        %v272 = vld [vmem:[%s217 + $0xd0] sm:$0xff]
        %v273 = vld [vmem:[%s217 + $0xd8] sm:$0xff]
        %v274 = vld [vmem:[%s217 + $0xe0] sm:$0xff]
        %v275 = vld [vmem:[%s217 + $0xe8] sm:$0xff]
        %v276 = vld [vmem:[%s217 + $0xf0] sm:$0xff]
        %v277 = vld [vmem:[%s217 + $0xf8] sm:$0xff]
        %v278 = vadd.f32 %v246, %v247
        %279 = vadd.xlane.f32.xlu0 %v278
        %v280 = vpop.xlane.xlu0 %279
        %v281 = vadd.f32 %v248, %v249
        %282 = vadd.xlane.f32.xlu0 %v281
        %v283 = vpop.xlane.xlu0 %282
        %v284 = vadd.f32 %v250, %v251
        %285 = vadd.xlane.f32.xlu0 %v284
        %v286 = vpop.xlane.xlu0 %285
        %v287 = vadd.f32 %v252, %v253
        %288 = vadd.xlane.f32.xlu0 %v287
        %v289 = vpop.xlane.xlu0 %288
        %v290 = vadd.f32 %v254, %v255
        %291 = vadd.xlane.f32.xlu0 %v290
        %v292 = vpop.xlane.xlu0 %291
        %v293 = vadd.f32 %v256, %v257
        %294 = vadd.xlane.f32.xlu0 %v293
        %v295 = vpop.xlane.xlu0 %294
        %v296 = vadd.f32 %v258, %v259
        %297 = vadd.xlane.f32.xlu0 %v296
        %v298 = vpop.xlane.xlu0 %297
        %v299 = vadd.f32 %v260, %v261
        %300 = vadd.xlane.f32.xlu0 %v299
        %v301 = vpop.xlane.xlu0 %300
        %v302 = vadd.f32 %v262, %v263
        %303 = vadd.xlane.f32.xlu0 %v302
        %v304 = vpop.xlane.xlu0 %303
        %v305 = vadd.f32 %v264, %v265
        %306 = vadd.xlane.f32.xlu0 %v305
        %v307 = vpop.xlane.xlu0 %306
        %v308 = vadd.f32 %v266, %v267
        %309 = vadd.xlane.f32.xlu0 %v308
        %v310 = vpop.xlane.xlu0 %309
        %v311 = vadd.f32 %v268, %v269
        %312 = vadd.xlane.f32.xlu0 %v311
        %v313 = vpop.xlane.xlu0 %312
        %v314 = vadd.f32 %v270, %v271
        %315 = vadd.xlane.f32.xlu0 %v314
        %v316 = vpop.xlane.xlu0 %315
        %v317 = vadd.f32 %v272, %v273
        %318 = vadd.xlane.f32.xlu0 %v317
        %v319 = vpop.xlane.xlu0 %318
        %v320 = vadd.f32 %v274, %v275
        %321 = vadd.xlane.f32.xlu0 %v320
        %v322 = vpop.xlane.xlu0 %321
        %v323 = vadd.f32 %v276, %v277
        %324 = vadd.xlane.f32.xlu0 %v323
        %v325 = vpop.xlane.xlu0 %324
        %v326 = vld [vmem:[%s1] sm:$0xff]
        %v327 = vld [vmem:[%s1 + $0x8] sm:$0xff]
        %v328 = vld [vmem:[%s1 + $0x10] sm:$0xff]
        %v329 = vld [vmem:[%s1 + $0x18] sm:$0xff]
        %v330 = vld [vmem:[%s1 + $0x20] sm:$0xff]
        %v331 = vld [vmem:[%s1 + $0x28] sm:$0xff]
        %v332 = vld [vmem:[%s1 + $0x30] sm:$0xff]
        %v333 = vld [vmem:[%s1 + $0x38] sm:$0xff]
        %v334 = vld [vmem:[%s2] sm:$0x1]
        %v336 = vlaneseq
        %v337 = vshrl.u32 %v336, 7
        %v338 = vsub.s32 0, %v337
        %v339 = vrot.slane %v334, %v338
        %v357 = vlaneseq
        %v358 = vand.u32 %v357, 127
        %v359 = vlaneseq
        %v360 = vshrl.u32 %v359, 7
        %v361 = vsub.s32 %v358, %v360
        %v362 = vrot.slane %v280, %v361
        %v363 = vadd.s32 %v358, 4294967288
        %v364 = vlaneseq
        %v365 = vshrl.u32 %v364, 7
        %v366 = vsub.s32 %v363, %v365
        %v367 = vrot.slane %v283, %v366
        %vm368 = vcmask 130112
        %v369 = vsel %vm368, %v367, %v362
        %v370 = vadd.s32 %v358, 4294967280
        %v371 = vlaneseq
        %v372 = vshrl.u32 %v371, 7
        %v373 = vsub.s32 %v370, %v372
        %v374 = vrot.slane %v286, %v373
        %vm375 = vcmask 195712
        %v376 = vsel %vm375, %v374, %v369
        %v377 = vadd.s32 %v358, 4294967272
        %v378 = vlaneseq
        %v379 = vshrl.u32 %v378, 7
        %v380 = vsub.s32 %v377, %v379
        %v381 = vrot.slane %v289, %v380
        %vm382 = vcmask 261312
        %v383 = vsel %vm382, %v381, %v376
        %v384 = vadd.s32 %v358, 4294967264
        %v385 = vlaneseq
        %v386 = vshrl.u32 %v385, 7
        %v387 = vsub.s32 %v384, %v386
        %v388 = vrot.slane %v292, %v387
        %vm389 = vcmask 326912
        %v390 = vsel %vm389, %v388, %v383
        %v391 = vadd.s32 %v358, 4294967256
        %v392 = vlaneseq
        %v393 = vshrl.u32 %v392, 7
        %v394 = vsub.s32 %v391, %v393
        %v395 = vrot.slane %v295, %v394
        %vm396 = vcmask 392512
        %v397 = vsel %vm396, %v395, %v390
        %v398 = vadd.s32 %v358, 4294967248
        %v399 = vlaneseq
        %v400 = vshrl.u32 %v399, 7
        %v401 = vsub.s32 %v398, %v400
        %v402 = vrot.slane %v298, %v401
        %vm403 = vcmask 458112
        %v404 = vsel %vm403, %v402, %v397
        %v405 = vadd.s32 %v358, 4294967240
        %v406 = vlaneseq
        %v407 = vshrl.u32 %v406, 7
        %v408 = vsub.s32 %v405, %v407
        %v409 = vrot.slane %v301, %v408
        %vm410 = vcmask 523712
        %v411 = vsel %vm410, %v409, %v404
        %v412 = vlaneseq
        %v413 = vshrl.u32 %v412, 7
        %v414 = vsub.s32 %v358, %v413
        %v415 = vrot.slane %v304, %v414
        %v416 = vlaneseq
        %v417 = vshrl.u32 %v416, 7
        %v418 = vsub.s32 %v363, %v417
        %v419 = vrot.slane %v307, %v418
        %v420 = vsel %vm368, %v419, %v415
        %v421 = vlaneseq
        %v422 = vshrl.u32 %v421, 7
        %v423 = vsub.s32 %v370, %v422
        %v424 = vrot.slane %v310, %v423
        %v425 = vsel %vm375, %v424, %v420
        %v426 = vlaneseq
        %v427 = vshrl.u32 %v426, 7
        %v428 = vsub.s32 %v377, %v427
        %v429 = vrot.slane %v313, %v428
        %v430 = vsel %vm382, %v429, %v425
        %v431 = vlaneseq
        %v432 = vshrl.u32 %v431, 7
        %v433 = vsub.s32 %v384, %v432
        %v434 = vrot.slane %v316, %v433
        %v435 = vsel %vm389, %v434, %v430
        %v436 = vlaneseq
        %v437 = vshrl.u32 %v436, 7
        %v438 = vsub.s32 %v391, %v437
        %v439 = vrot.slane %v319, %v438
        %v440 = vsel %vm396, %v439, %v435
        %v441 = vlaneseq
        %v442 = vshrl.u32 %v441, 7
        %v443 = vsub.s32 %v398, %v442
        %v444 = vrot.slane %v322, %v443
        %v445 = vsel %vm403, %v444, %v440
        %v446 = vlaneseq
        %v447 = vshrl.u32 %v446, 7
        %v448 = vsub.s32 %v405, %v447
        %v449 = vrot.slane %v325, %v448
        %v450 = vsel %vm410, %v449, %v445
        %vm451 = vcmask 1041409
        %v452 = vsel %vm451, %v450, %v411
        %vm453 = vcmask 523264
        %v454 = vsel %vm453, %v452, 0
        %456 = vmatprep.subr.mxu0 0.0
        %457 = vmatpush1.msra.mxu0 %v326
        %458 = vmatprep.subr.mxu0 0.0
        %459 = vmatpush1.msra.mxu0 %v327
        %460 = vmatprep.subr.mxu0 0.0
        %461 = vmatpush1.msra.mxu0 %v328
        %462 = vmatprep.subr.mxu0 0.0
        %463 = vmatpush1.msra.mxu0 %v329
        %464 = vmatprep.subr.mxu0 0.0
        %465 = vmatpush1.msra.mxu0 %v330
        %466 = vmatprep.subr.mxu0 0.0
        %467 = vmatpush1.msra.mxu0 %v331
        %468 = vmatprep.subr.mxu0 0.0
        %469 = vmatpush1.msra.mxu0 %v332
        %470 = vmatprep.subr.mxu0 0.0
        %471 = vmatpush1.msra.mxu0 %v333
        %472 = vmatprep.subr.mxu0 0.0
        %473 = vmatpush1.msra.mxu0 0.0
        %474 = vmatprep.subr.mxu0 0.0
        %475 = vmatpush1.msra.mxu0 0.0
        %476 = vmatprep.subr.mxu0 0.0
        %477 = vmatpush1.msra.mxu0 0.0
        %478 = vmatprep.subr.mxu0 0.0
        %479 = vmatpush1.msra.mxu0 0.0
        %480 = vmatprep.subr.mxu0 0.0
        %481 = vmatpush1.msra.mxu0 0.0
        %482 = vmatprep.subr.mxu0 0.0
        %483 = vmatpush1.msra.mxu0 0.0
        %484 = vmatprep.subr.mxu0 0.0
        %485 = vmatpush1.msra.mxu0 0.0
        %486 = vmatprep.subr.mxu0 0.0
        %487 = vmatpush1.msra.mxu0 0.0
        %488 = vmatprep.subr.mxu0 0.0
        %489 = vmatpush1.msra.mxu0 0.0
        %490 = vmatprep.subr.mxu0 0.0
        %491 = vmatpush1.msra.mxu0 0.0
        %492 = vmatprep.subr.mxu0 0.0
        %493 = vmatpush1.msra.mxu0 0.0
        %494 = vmatprep.subr.mxu0 0.0
        %495 = vmatpush1.msra.mxu0 0.0
        %496 = vmatprep.subr.mxu0 0.0
        %497 = vmatpush1.msra.mxu0 0.0
        %498 = vmatprep.subr.mxu0 0.0
        %499 = vmatpush1.msra.mxu0 0.0
        %500 = vmatprep.subr.mxu0 0.0
        %501 = vmatpush1.msra.mxu0 0.0
        %502 = vmatprep.subr.mxu0 0.0
        %503 = vmatpush1.msra.mxu0 0.0
        %504 = vmatprep.subr.mxu0 0.0
        %505 = vmatpush1.msra.mxu0 0.0
        %506 = vmatprep.subr.mxu0 0.0
        %507 = vmatpush1.msra.mxu0 0.0
        %508 = vmatprep.subr.mxu0 0.0
        %509 = vmatpush1.msra.mxu0 0.0
        %510 = vmatprep.subr.mxu0 0.0
        %511 = vmatpush1.msra.mxu0 0.0
        %512 = vmatprep.subr.mxu0 0.0
        %513 = vmatpush1.msra.mxu0 0.0
        %514 = vmatprep.subr.mxu0 0.0
        %515 = vmatpush1.msra.mxu0 0.0
        %516 = vmatprep.subr.mxu0 0.0
        %517 = vmatpush1.msra.mxu0 0.0
        %518 = vmatprep.subr.mxu0 0.0
        %519 = vmatpush1.msra.mxu0 0.0
        %520 = vmatprep.mubr.f32.mxu0 0.0
        %521 = vmatmul.mubr.f32.gmra.mrb[0].mxu0 %v454
        %v522 = vpop.f32.mrb[0].mxu0
        %v523 = vadd.f32 %v339, %v522
        %v524 = vpop.f32.mrb[0].mxu0
        %525 = vdwg.mxu0
        %v526 = vmax.f32 %v523, 0.0
        %v527 = vld [vmem:[%s3] sm:$0xf]
        %v528 = vld [vmem:[%s4] sm:$0x1]
        %v530 = vlaneseq
        %v531 = vshrl.u32 %v530, 7
        %v532 = vsub.s32 0, %v531
        %v533 = vrot.slane %v528, %v532
        %vm535 = vcmask 31744
        %v537 = vsel %vm535, %v526, 0
        %vm539 = vcmask 1043456
        %v541 = vsel %vm539, %v527, 0
        %543 = vmatprep.subr.mxu0 0.0
        %544 = vmatpush1.msra.mxu0 %v541
        %545 = vmatprep.subr.mxu0 0.0
        %546 = vmatpush1.msra.mxu0 0.0
        %547 = vmatprep.subr.mxu0 0.0
        %548 = vmatpush1.msra.mxu0 0.0
        %549 = vmatprep.subr.mxu0 0.0
        %550 = vmatpush1.msra.mxu0 0.0
        %551 = vmatprep.subr.mxu0 0.0
        %552 = vmatpush1.msra.mxu0 0.0
        %553 = vmatprep.subr.mxu0 0.0
        %554 = vmatpush1.msra.mxu0 0.0
        %555 = vmatprep.subr.mxu0 0.0
        %556 = vmatpush1.msra.mxu0 0.0
        %557 = vmatprep.subr.mxu0 0.0
        %558 = vmatpush1.msra.mxu0 0.0
        %559 = vmatprep.subr.mxu0 0.0
        %560 = vmatpush1.msra.mxu0 0.0
        %561 = vmatprep.subr.mxu0 0.0
        %562 = vmatpush1.msra.mxu0 0.0
        %563 = vmatprep.subr.mxu0 0.0
        %564 = vmatpush1.msra.mxu0 0.0
        %565 = vmatprep.subr.mxu0 0.0
        %566 = vmatpush1.msra.mxu0 0.0
        %567 = vmatprep.subr.mxu0 0.0
        %568 = vmatpush1.msra.mxu0 0.0
        %569 = vmatprep.subr.mxu0 0.0
        %570 = vmatpush1.msra.mxu0 0.0
        %571 = vmatprep.subr.mxu0 0.0
        %572 = vmatpush1.msra.mxu0 0.0
        %573 = vmatprep.subr.mxu0 0.0
        %574 = vmatpush1.msra.mxu0 0.0
        %575 = vmatprep.subr.mxu0 0.0
        %576 = vmatpush1.msra.mxu0 0.0
        %577 = vmatprep.subr.mxu0 0.0
        %578 = vmatpush1.msra.mxu0 0.0
        %579 = vmatprep.subr.mxu0 0.0
        %580 = vmatpush1.msra.mxu0 0.0
        %581 = vmatprep.subr.mxu0 0.0
        %582 = vmatpush1.msra.mxu0 0.0
        %583 = vmatprep.subr.mxu0 0.0
        %584 = vmatpush1.msra.mxu0 0.0
        %585 = vmatprep.subr.mxu0 0.0
        %586 = vmatpush1.msra.mxu0 0.0
        %587 = vmatprep.subr.mxu0 0.0
        %588 = vmatpush1.msra.mxu0 0.0
        %589 = vmatprep.subr.mxu0 0.0
        %590 = vmatpush1.msra.mxu0 0.0
        %591 = vmatprep.subr.mxu0 0.0
        %592 = vmatpush1.msra.mxu0 0.0
        %593 = vmatprep.subr.mxu0 0.0
        %594 = vmatpush1.msra.mxu0 0.0
        %595 = vmatprep.subr.mxu0 0.0
        %596 = vmatpush1.msra.mxu0 0.0
        %597 = vmatprep.subr.mxu0 0.0
        %598 = vmatpush1.msra.mxu0 0.0
        %599 = vmatprep.subr.mxu0 0.0
        %600 = vmatpush1.msra.mxu0 0.0
        %601 = vmatprep.subr.mxu0 0.0
        %602 = vmatpush1.msra.mxu0 0.0
        %603 = vmatprep.subr.mxu0 0.0
        %604 = vmatpush1.msra.mxu0 0.0
        %605 = vmatprep.subr.mxu0 0.0
        %606 = vmatpush1.msra.mxu0 0.0
        %607 = vmatprep.mubr.f32.mxu0 0.0
        %608 = vmatmul.mubr.f32.gmra.mrb[0].mxu0 %v537
        %v609 = vpop.f32.mrb[0].mxu0
        %v610 = vadd.f32 %v533, %v609
        %v611 = vpop.f32.mrb[0].mxu0
        %612 = vdwg.mxu0
        %v613 = vxor.u32 %v610, 2147483648
        %v614 = vmul.f32 %v613, 1.442695
        %v615 = vpow.pop %v614
        %v616 = vadd.f32 %v615, 1.0
        %v617 = vrcp.pop %v616
        %v618 = vmul.f32 1.0, %v617
        %v619 = vlaneseq
        %v620 = vshrl.u32 %v619, 7
        %v621 = vsub.s32 0, %v620
        %v622 = vrot.slane %v618, %v621
        %624 = vbcast.lane.b32.xlu0 %v622, 256
        %v625 = vpop.permute.xlu0 %624
        %s627 = sor.u32 256, 8
        %628 = vbcast.lane.b32.xlu0 %v622, %s627
        %v629 = vpop.permute.xlu0 %628
        %s631 = sor.u32 256, 16
        %632 = vbcast.lane.b32.xlu0 %v622, %s631
        %v633 = vpop.permute.xlu0 %632
        %s635 = sor.u32 256, 24
        %636 = vbcast.lane.b32.xlu0 %v622, %s635
        %v637 = vpop.permute.xlu0 %636
        %s639 = sor.u32 256, 32
        %640 = vbcast.lane.b32.xlu0 %v622, %s639
        %v641 = vpop.permute.xlu0 %640
        %s643 = sor.u32 256, 40
        %644 = vbcast.lane.b32.xlu0 %v622, %s643
        %v645 = vpop.permute.xlu0 %644
        %s647 = sor.u32 256, 48
        %648 = vbcast.lane.b32.xlu0 %v622, %s647
        %v649 = vpop.permute.xlu0 %648
        %s651 = sor.u32 256, 56
        %652 = vbcast.lane.b32.xlu0 %v622, %s651
        %v653 = vpop.permute.xlu0 %652
        %v654 = vlaneseq
        %v655 = vshrl.u32 %v654, 7
        %v656 = vsub.s32 1, %v655
        %v657 = vrot.slane %v618, %v656
        %659 = vbcast.lane.b32.xlu0 %v657, 256
        %v660 = vpop.permute.xlu0 %659
        %s662 = sor.u32 256, 8
        %663 = vbcast.lane.b32.xlu0 %v657, %s662
        %v664 = vpop.permute.xlu0 %663
        %s666 = sor.u32 256, 16
        %667 = vbcast.lane.b32.xlu0 %v657, %s666
        %v668 = vpop.permute.xlu0 %667
        %s670 = sor.u32 256, 24
        %671 = vbcast.lane.b32.xlu0 %v657, %s670
        %v672 = vpop.permute.xlu0 %671
        %s674 = sor.u32 256, 32
        %675 = vbcast.lane.b32.xlu0 %v657, %s674
        %v676 = vpop.permute.xlu0 %675
        %s678 = sor.u32 256, 40
        %679 = vbcast.lane.b32.xlu0 %v657, %s678
        %v680 = vpop.permute.xlu0 %679
        %s682 = sor.u32 256, 48
        %683 = vbcast.lane.b32.xlu0 %v657, %s682
        %v684 = vpop.permute.xlu0 %683
        %s686 = sor.u32 256, 56
        %687 = vbcast.lane.b32.xlu0 %v657, %s686
        %v688 = vpop.permute.xlu0 %687
        %v689 = vmul.f32 %v246, %v625
        %v690 = vmul.f32 %v247, %v625
        %v691 = vmul.f32 %v248, %v629
        %v692 = vmul.f32 %v249, %v629
        %v693 = vmul.f32 %v250, %v633
        %v694 = vmul.f32 %v251, %v633
        %v695 = vmul.f32 %v252, %v637
        %v696 = vmul.f32 %v253, %v637
        %v697 = vmul.f32 %v254, %v641
        %v698 = vmul.f32 %v255, %v641
        %v699 = vmul.f32 %v256, %v645
        %v700 = vmul.f32 %v257, %v645
        %v701 = vmul.f32 %v258, %v649
        %v702 = vmul.f32 %v259, %v649
        %v703 = vmul.f32 %v260, %v653
        %v704 = vmul.f32 %v261, %v653
        %v705 = vmul.f32 %v262, %v660
        %v706 = vmul.f32 %v263, %v660
        %v707 = vmul.f32 %v264, %v664
        %v708 = vmul.f32 %v265, %v664
        %v709 = vmul.f32 %v266, %v668
        %v710 = vmul.f32 %v267, %v668
        %v711 = vmul.f32 %v268, %v672
        %v712 = vmul.f32 %v269, %v672
        %v713 = vmul.f32 %v270, %v676
        %v714 = vmul.f32 %v271, %v676
        %v715 = vmul.f32 %v272, %v680
        %v716 = vmul.f32 %v273, %v680
        %v717 = vmul.f32 %v274, %v684
        %v718 = vmul.f32 %v275, %v684
        %v719 = vmul.f32 %v276, %v688
        %v720 = vmul.f32 %v277, %v688
        %721 = vst [vmem:[%s243] sm:$0xff] %v689
        %722 = vst [vmem:[%s243 + $0x8] sm:$0xff] %v690
        %723 = vst [vmem:[%s243 + $0x10] sm:$0xff] %v691
        %724 = vst [vmem:[%s243 + $0x18] sm:$0xff] %v692
        %725 = vst [vmem:[%s243 + $0x20] sm:$0xff] %v693
        %726 = vst [vmem:[%s243 + $0x28] sm:$0xff] %v694
        %727 = vst [vmem:[%s243 + $0x30] sm:$0xff] %v695
        %728 = vst [vmem:[%s243 + $0x38] sm:$0xff] %v696
        %729 = vst [vmem:[%s243 + $0x40] sm:$0xff] %v697
        %730 = vst [vmem:[%s243 + $0x48] sm:$0xff] %v698
        %731 = vst [vmem:[%s243 + $0x50] sm:$0xff] %v699
        %732 = vst [vmem:[%s243 + $0x58] sm:$0xff] %v700
        %733 = vst [vmem:[%s243 + $0x60] sm:$0xff] %v701
        %734 = vst [vmem:[%s243 + $0x68] sm:$0xff] %v702
        %735 = vst [vmem:[%s243 + $0x70] sm:$0xff] %v703
        %736 = vst [vmem:[%s243 + $0x78] sm:$0xff] %v704
        %737 = vst [vmem:[%s243 + $0x80] sm:$0xff] %v705
        %738 = vst [vmem:[%s243 + $0x88] sm:$0xff] %v706
        %739 = vst [vmem:[%s243 + $0x90] sm:$0xff] %v707
        %740 = vst [vmem:[%s243 + $0x98] sm:$0xff] %v708
        %741 = vst [vmem:[%s243 + $0xa0] sm:$0xff] %v709
        %742 = vst [vmem:[%s243 + $0xa8] sm:$0xff] %v710
        %743 = vst [vmem:[%s243 + $0xb0] sm:$0xff] %v711
        %744 = vst [vmem:[%s243 + $0xb8] sm:$0xff] %v712
        %745 = vst [vmem:[%s243 + $0xc0] sm:$0xff] %v713
        %746 = vst [vmem:[%s243 + $0xc8] sm:$0xff] %v714
        %747 = vst [vmem:[%s243 + $0xd0] sm:$0xff] %v715
        %748 = vst [vmem:[%s243 + $0xd8] sm:$0xff] %v716
        %749 = vst [vmem:[%s243 + $0xe0] sm:$0xff] %v717
        %750 = vst [vmem:[%s243 + $0xe8] sm:$0xff] %v718
        %751 = vst [vmem:[%s243 + $0xf0] sm:$0xff] %v719
        %752 = vst [vmem:[%s243 + $0xf8] sm:$0xff] %v720
        %s753 = sand.u32 %s140, 1
        %s754 = scalar_lea.sflag [#allocation4], %s753
        %s755 = sand.u32 %s140, 1
        %s756 = smul.addr %s755, 256
        %s757 = scalar_lea.vmem [#allocation5], %s756
        // Predicated region
        $region45: #{tpu_custom_call.1} parent=39 // pred_check
          %p758 = pneg %p150
        $region46: #{tpu_custom_call.1} parent=39 // pred_check_branch
          %760 = sbr.rel (%p758) target = $region48
        $region47: #{tpu_custom_call.1} parent=39 // pred_region
          %s761 = smul.u32 2, %s22
          %s763 = ssub.s32 4096, 4096
          %764 = vsyncadd %s754, %s763
          %s765 = smul.addr %s761, 16
          %s766 = smul.addr %s765, 128
          %s767 = scalar_lea.hbm %s5, %s766
          %s768 = sshll.u32 %s757, 4
          %s769 = int_to_ptr.vmem [resolvable:$true] %s768
          %774 = dma.vmem_to_hbm [thread:$0]  %s769, 4096, %s767, %s754, 256, 256, 16
        $region48: #{tpu_custom_call.1} parent=39 // pred_fallthru
          _
      $region40: #{tpu_custom_call.1} parent=5 // pred_fallthru
        _
      %p775 = scmp.le.s32.totalorder 2, %s17
      // Predicated region
      $region49: #{tpu_custom_call.1} parent=5 // pred_check
        %p776 = pneg %p775
      $region50: #{tpu_custom_call.1} parent=5 // pred_check_branch
        %778 = sbr.rel (%p776) target = $region52
      $region51: #{tpu_custom_call.1} parent=5 // pred_region
        %s779 = ssub.s32 %s17, 2
        // Predicated region
        $region53: #{tpu_custom_call.1} parent=51 // pred_check
          %p780 = pneg %p156
        $region54: #{tpu_custom_call.1} parent=51 // pred_check_branch
          %782 = sbr.rel (%p780) target = $region56
        $region55: #{tpu_custom_call.1} parent=51 // pred_region
          %s783 = sand.u32 %s141, 1
          %s784 = scalar_lea.sflag [#allocation4], %s783
          %s785 = sand.u32 %s141, 1
          %s786 = smul.addr %s785, 256
          %s787 = scalar_lea.vmem [#allocation5], %s786
          %788 = dma.done %s784, 4096
        $region56: #{tpu_custom_call.1} parent=51 // pred_fallthru
          _
      $region52: #{tpu_custom_call.1} parent=5 // pred_fallthru
        _
    $region6: #{tpu_custom_call.1} parent=1 // loop_footer
      %s21 = sadd.s32 1, %s17
    $region7: #{tpu_custom_call.1} parent=1 // loop_footer_branch
      %16 = sbr.rel target = $region3
    $region8: #{tpu_custom_call.1} parent=1 // loop_exit
      _
    %789 = vsyncpa [#allocation3], 1
    %s790 = scalar_lea.sflag [#allocation3], 1
    %791 = vsyncpa %s790, 1
    %792 = vsyncpa [#allocation4], 1
    %s793 = scalar_lea.sflag [#allocation4], 1
    %794 = vsyncpa %s793, 1

</llo_original>
